<compile_context>
chip_gen: v5e
topology: v5e:2x2
jax: 0.10.0
libtpu: 0.0.40
codegen_flags: <defaults>
</compile_context>

<pallas_src>
import functools

import jax
import jax.numpy as jnp
from jax import lax
from jax.experimental import pallas as pl
from jax.experimental.pallas import tpu as pltpu


_TARGET_TILE_BYTES = 8 * 1024 * 1024      # per-tile input-byte target (roofline plateau)
_FALLBACK_VMEM_BYTES = 64 * 1024 * 1024   # conservative fallback (v7x per-TC physical)


def _vmem_capacity_bytes():
    try:
        cap = int(pltpu.get_tpu_info().vmem_capacity_bytes)
        if cap > 0:
            return cap
    except Exception:
        pass
    return _FALLBACK_VMEM_BYTES


def _rmsnorm_kernel(x_ref, w_ref, o_ref, *, eps, inv_dim, valid_dim, mask_lanes):
    # x_ref: (block_rows, dim_block), w_ref: (1, dim_block), o_ref: same as x_ref.
    w = w_ref[...].astype(jnp.float32)
    xf = x_ref[...].astype(jnp.float32)
    if mask_lanes:
        # Lane block overhangs the real dim: keep garbage lanes out of the stat.
        lane = lax.broadcasted_iota(jnp.int32, xf.shape, 1)
        xsq = jnp.where(lane < valid_dim, xf * xf, 0.0)
    else:
        xsq = xf * xf
    # sum(x^2) / real_dim == mean(x^2); masked lanes contribute nothing.
    ss = jnp.sum(xsq, axis=-1, keepdims=True)
    inv = lax.rsqrt(ss * inv_dim + eps)
    # Re-read + upcast the narrow-dtype tile instead of keeping the f32 copy
    # live across the full-row reduction (less VMEM scratch / spill risk).
    o_ref[...] = (x_ref[...].astype(jnp.float32) * inv * w).astype(o_ref.dtype)


def _even_grid_block_rows(rows, block_rows, sublane):
    """Nudge block_rows so the row grid has an even step count (v7x dual-TC balance)."""
    groups = pl.cdiv(rows, sublane)
    if groups < 2:
        return block_rows
    steps = pl.cdiv(rows, block_rows)
    if steps % 2 == 0:
        return block_rows
    target = steps + 1
    cand = max(sublane, pl.cdiv(groups, target) * sublane)
    if pl.cdiv(rows, cand) % 2 == 0:
        return cand
    return block_rows


def _pick_block_rows(rows, dim_block, itemsize, sublane, vmem_budget):
    """Largest sublane-aligned row tile within the VMEM budget and tile-byte target."""
    # Resident bytes per tile row: 2x input + 2x output double buffers (input
    # dtype) plus ~1 f32-wide streaming temporary.
    bytes_per_row = dim_block * (4 * itemsize + 4)
    budget_rows = max(1, vmem_budget // bytes_per_row)
    cap_rows = max(1, _TARGET_TILE_BYTES // (dim_block * itemsize))
    block_rows = min(budget_rows, cap_rows) // sublane * sublane
    block_rows = max(sublane, block_rows)
    block_rows = min(block_rows, pl.cdiv(rows, sublane) * sublane)
    return _even_grid_block_rows(rows, block_rows, sublane)


def rms_norm(x, weight, eps: float = 1e-6):
    """RMSNorm over the last dimension of x, scaled by `weight` (shape (dim,))."""
    orig_shape = x.shape
    dim = orig_shape[-1]
    assert weight.shape == (dim,)

    rows = 1
    for s in orig_shape[:-1]:
        rows *= s
    x2d = x.reshape(rows, dim)
    w2d = weight.reshape(1, dim)

    # Ragged lane dim handled in-kernel: lane block width rounded up to a
    # multiple of 128 (one overhanging block), padded lanes masked out of the
    # reduction, output overhang clipped by Pallas.  No wrapper pad / slice.
    dim_block = pl.cdiv(dim, 128) * 128
    mask_lanes = dim_block != dim

    itemsize = jnp.dtype(x.dtype).itemsize
    sublane = max(8, 32 // itemsize)  # 8 for f32, 16 for bf16, 32 for int8/fp8

    vmem_cap = _vmem_capacity_bytes()
    vmem_budget = vmem_cap // 3   # pipelined buffers + in-kernel temps
    vmem_limit = vmem_cap // 2    # scoped-VMEM raise (v5e default is only 16 MiB)

    block_rows = _pick_block_rows(rows, dim_block, itemsize, sublane, vmem_budget)
    grid = (pl.cdiv(rows, block_rows),)

    out2d = pl.pallas_call(
        functools.partial(
            _rmsnorm_kernel,
            eps=eps,
            inv_dim=1.0 / dim,
            valid_dim=dim,
            mask_lanes=mask_lanes,
        ),
        out_shape=jax.ShapeDtypeStruct((rows, dim), x.dtype),
        grid_spec=pltpu.PrefetchScalarGridSpec(
            num_scalar_prefetch=0,
            grid=grid,
            in_specs=[
                pl.BlockSpec((block_rows, dim_block), lambda i: (i, 0)),
                pl.BlockSpec((1, dim_block), lambda i: (0, 0)),  # weight: constant block
            ],
            out_specs=pl.BlockSpec((block_rows, dim_block), lambda i: (i, 0)),
        ),
        compiler_params=pltpu.CompilerParams(
            dimension_semantics=("parallel",),
            vmem_limit_bytes=vmem_limit,
        ),
    )(x2d, w2d)

    return out2d.reshape(orig_shape)


def _reference_rms_norm(x, weight, eps=1e-6):
    xf = x.astype(jnp.float32)
    ms = jnp.mean(xf * xf, axis=-1, keepdims=True)
    return (xf * lax.rsqrt(ms + eps) * weight.astype(jnp.float32)).astype(x.dtype)


if __name__ == "__main__":
    key = jax.random.PRNGKey(0)
    batch, seq, dim = 2, 8, 32

    x = jax.random.normal(key, (batch, seq, dim), dtype=jnp.float32)
    # Deterministic parameter init matching nn.Parameter(torch.ones(dim)).
    weight = jnp.ones((dim,), dtype=jnp.float32)

    out = rms_norm(x, weight, eps=1e-6)
    out = jax.block_until_ready(out)

    ref = _reference_rms_norm(x, weight, eps=1e-6)
    assert out.shape == x.shape and out.dtype == x.dtype
    assert jnp.allclose(out, ref, atol=1e-5, rtol=1e-5)

    print("KERNEL_OK")
</pallas_src>

<mosaic_0001>
module attributes {stable_mosaic.version = 11 : i64} {
  func.func @_rmsnorm_kernel(%arg0: i32, %arg1: memref<8x128xf32, #tpu.memory_space<vmem>>, %arg2: memref<1x128xf32, #tpu.memory_space<vmem>>, %arg3: memref<8x128xf32, #tpu.memory_space<vmem>>) attributes {dimension_semantics = [#tpu.dimension_semantics<parallel>], iteration_bounds = array<i64: 2>, scalar_prefetch = 0 : i64, scratch_operands = 0 : i64, tpu.core_type = #tpu.core_type<tc>, window_params = [{transform_indices = @transform_0, window_bounds = array<i64: 8, 128>}, {transform_indices = @transform_1, window_bounds = array<i64: 1, 128>}, {transform_indices = @transform_2, window_bounds = array<i64: 8, 128>}]} {
    %c0 = arith.constant 0 : index
    %c0_0 = arith.constant 0 : index
    %0 = vector.load %arg2[%c0, %c0_0] : memref<1x128xf32, #tpu.memory_space<vmem>>, vector<1x128xf32>
    %c0_1 = arith.constant 0 : index
    %c0_2 = arith.constant 0 : index
    %1 = vector.load %arg1[%c0_1, %c0_2] : memref<8x128xf32, #tpu.memory_space<vmem>>, vector<8x128xf32>
    %2 = tpu.iota {dimensions = array<i32: 1>} : vector<8x128xi32>
    %c32_i32 = arith.constant 32 : i32
    %3 = vector.broadcast %c32_i32 : i32 to vector<8x128xi32>
    %4 = arith.cmpi slt, %2, %3 : vector<8x128xi32>
    %5 = arith.mulf %1, %1 : vector<8x128xf32>
    %cst = arith.constant 0.000000e+00 : f32
    %6 = vector.broadcast %cst : f32 to vector<8x128xf32>
    %7 = arith.select %4, %5, %6 : vector<8x128xi1>, vector<8x128xf32>
    %cst_3 = arith.constant dense<0.000000e+00> : vector<8xf32>
    %8 = vector.multi_reduction <add>, %7, %cst_3 [1] : vector<8x128xf32> to vector<8xf32>
    %9 = vector.shape_cast %8 : vector<8xf32> to vector<8x1xf32>
    %cst_4 = arith.constant 3.125000e-02 : f32
    %10 = vector.broadcast %cst_4 : f32 to vector<8x1xf32>
    %11 = arith.mulf %9, %10 : vector<8x1xf32>
    %cst_5 = arith.constant 9.99999997E-7 : f32
    %12 = vector.broadcast %cst_5 : f32 to vector<8x1xf32>
    %13 = arith.addf %11, %12 : vector<8x1xf32>
    %14 = math.rsqrt %13 : vector<8x1xf32>
    %c0_6 = arith.constant 0 : index
    %c0_7 = arith.constant 0 : index
    %15 = vector.load %arg1[%c0_6, %c0_7] : memref<8x128xf32, #tpu.memory_space<vmem>>, vector<8x128xf32>
    %16 = vector.broadcast %14 : vector<8x1xf32> to vector<8x128xf32>
    %17 = arith.mulf %15, %16 : vector<8x128xf32>
    %18 = vector.broadcast %0 : vector<1x128xf32> to vector<8x128xf32>
    %19 = arith.mulf %17, %18 : vector<8x128xf32>
    %c0_8 = arith.constant 0 : index
    %c0_9 = arith.constant 0 : index
    %20 = vector.load %arg3[%c0_8, %c0_9] : memref<8x128xf32, #tpu.memory_space<vmem>>, vector<8x128xf32>
    tpu.vector_store %arg3[%c0_8, %c0_9], %19 {strides = array<i32>} : memref<8x128xf32, #tpu.memory_space<vmem>>, vector<8x128xf32>,
    return
  }
  func.func @transform_0(%arg0: i32) -> (i32, i32) {
    %c0_i32 = arith.constant 0 : i32
    %c0_i32_0 = arith.constant 0 : i32
    return %arg0, %c0_i32 : i32, i32
  }
  func.func @transform_1(%arg0: i32) -> (i32, i32) {
    %c0_i32 = arith.constant 0 : i32
    %c0_i32_0 = arith.constant 0 : i32
    %c0_i32_1 = arith.constant 0 : i32
    return %c0_i32, %c0_i32_0 : i32, i32
  }
  func.func @transform_2(%arg0: i32) -> (i32, i32) {
    %c0_i32 = arith.constant 0 : i32
    %c0_i32_0 = arith.constant 0 : i32
    return %arg0, %c0_i32 : i32, i32
  }
}

</mosaic_0001>

<llo_original>
// kernel: tpu_custom_call.1
$region0: #{tpu_custom_call.1}
  #allocation0 [shape = 'u32[]', space=smem, size = 0x4, offset = 0x4, fixed_abs, tag = 'smem constant byte address 0x4 - core index']
  #allocation1 [shape = 'u32[72,128]{1,0:T(1,128)}', space=vmem, size = 0x9000, scoped, tag = 'internal scratch']
  %s0 = inlined_call_operand.hbm [shape: f32[16,32], index: 0, kind: input, shape index: {}]
  %s1 = inlined_call_operand.hbm [shape: f32[1,32], index: 1, kind: input, shape index: {}]
  %s2 = inlined_call_operand.hbm [shape: f32[16,32], index: 2, kind: output, shape index: {}]
  %s3 = sld [smem:[#allocation0]]
  $region49: #{tpu_custom_call.1} parent=0
    _
  %s5 = ssub.s32 1, %s3
  %s6 = scalar_select 0, %s5, %s3
  $region1: #{tpu_custom_call.1} parent=0
    #allocation2 [shape = 'u8[8192]{0}', space=vmem, size = 0x2000, scoped, tag = 'input window, operand 0']
    #allocation3 [shape = 's32[2]{0}', space=sflag, size = 0x8, scoped, tag = 'scoped memory for tpu_custom_call.1']
    #allocation4 [shape = 's32[2]{0}', space=sflag, size = 0x8, scoped, tag = 'scoped memory for tpu_custom_call.1']
    #allocation5 [shape = 'u8[512]{0}', space=vmem, size = 0x400, scoped, tag = 'input window, operand 1, single buffered']
    #allocation6 [shape = 's32[1]{0}', space=sflag, size = 0x4, scoped, tag = 'scoped memory for tpu_custom_call.1']
    #allocation7 [shape = 'u8[8192]{0}', space=vmem, size = 0x2000, scoped, tag = 'output window, operand 0']
    %7 = vsyncpa [#allocation3], 0
    %s8 = scalar_lea.sflag [#allocation3], 1
    %9 = vsyncpa %s8, 0
    %10 = vsyncpa [#allocation6], 0
    %11 = vsyncpa [#allocation4], 0
    %s12 = scalar_lea.sflag [#allocation4], 1
    %13 = vsyncpa %s12, 0
    loop: start=0, step=1, limit=4
    $region2: #{tpu_custom_call.1} parent=1 // loop_pre_header
      _
    $region3: #{tpu_custom_call.1} parent=1 // loop_header
      %s15 = sphi 0, %s19
      %p16 = scmp.ge.s32.totalorder %s15, 4
      %s25 = sphi 0, %s27
      %s28 = sphi 0, %s25
      %s29 = sphi 0, %s28
      %s45 = sphi 0, %s29
      %s49 = sphi 0, %s49
      %s51 = sphi 0, %s49
      %s52 = sphi 0, %s51
      %s66 = sphi 0, %s52
      %s72 = sphi 0, %s74
      %s75 = sphi 0, %s72
      %s76 = sphi 0, %s75
      %s92 = sphi 0, %s76
    $region4: #{tpu_custom_call.1} parent=1 // loop_header_branch
      %18 = sbr.rel (%p16) target = $region8
    $region5: #{tpu_custom_call.1} parent=1 // loop_body
      %s20 = ssub.s32 %s15, 1
      %s21 = ssub.s32 %s15, 2
      %s22 = sadd.s32 %s15, 1
      %s23 = ssub.s32 %s15, %s22
      %p24 = scmp.eq.s32.totalorder %s23, 0
      %s26 = sadd.s32 %s25, 1
      %s27 = scalar_select %p24, %s25, %s26
      %p30 = pneg %p24
      %p31 = scmp.eq.s32.totalorder %s15, 1
      %p32 = por %p30, %p31
      %p33 = scmp.ne.s32.totalorder %s25, %s28
      %p34 = scmp.eq.s32.totalorder %s15, 0
      %p35 = por %p33, %p34
      %p36 = scmp.ne.s32.totalorder %s25, %s28
      %p37 = scmp.eq.s32.totalorder %s20, 1
      %p38 = por %p36, %p37
      %p39 = scmp.ne.s32.totalorder %s28, %s29
      %p40 = scmp.eq.s32.totalorder %s20, 0
      %p41 = por %p39, %p40
      %p42 = scmp.ne.s32.totalorder %s28, %s29
      %p43 = scmp.eq.s32.totalorder %s21, 1
      %p44 = por %p42, %p43
      %p46 = scmp.ne.s32.totalorder %s29, %s45
      %p47 = scmp.eq.s32.totalorder %s21, 0
      %p48 = por %p46, %p47
      %s50 = sadd.s32 %s49, 1
      %p53 = scmp.eq.s32.totalorder %s15, 1
      %p54 = scmp.ne.s32.totalorder %s49, %s51
      %p55 = scmp.eq.s32.totalorder %s15, 0
      %p56 = por %p54, %p55
      %p57 = scmp.ne.s32.totalorder %s49, %s51
      %p58 = scmp.eq.s32.totalorder %s20, 1
      %p59 = por %p57, %p58
      %p60 = scmp.ne.s32.totalorder %s51, %s52
      %p61 = scmp.eq.s32.totalorder %s20, 0
      %p62 = por %p60, %p61
      %p63 = scmp.ne.s32.totalorder %s51, %s52
      %p64 = scmp.eq.s32.totalorder %s21, 1
      %p65 = por %p63, %p64
      %p67 = scmp.ne.s32.totalorder %s52, %s66
      %p68 = scmp.eq.s32.totalorder %s21, 0
      %p69 = por %p67, %p68
      %s70 = ssub.s32 %s15, %s22
      %p71 = scmp.eq.s32.totalorder %s70, 0
      %s73 = sadd.s32 %s72, 1
      %s74 = scalar_select %p71, %s72, %s73
      %p77 = pneg %p71
      %p78 = scmp.eq.s32.totalorder %s15, 1
      %p79 = por %p77, %p78
      %p80 = scmp.ne.s32.totalorder %s72, %s75
      %p81 = scmp.eq.s32.totalorder %s15, 0
      %p82 = por %p80, %p81
      %p83 = scmp.ne.s32.totalorder %s72, %s75
      %p84 = scmp.eq.s32.totalorder %s20, 1
      %p85 = por %p83, %p84
      %p86 = scmp.ne.s32.totalorder %s75, %s76
      %p87 = scmp.eq.s32.totalorder %s20, 0
      %p88 = por %p86, %p87
      %p89 = scmp.ne.s32.totalorder %s75, %s76
      %p90 = scmp.eq.s32.totalorder %s21, 1
      %p91 = por %p89, %p90
      %p93 = scmp.ne.s32.totalorder %s76, %s92
      %p94 = scmp.eq.s32.totalorder %s21, 0
      %p95 = por %p93, %p94
      %p96 = scmp.le.s32.totalorder 1, %s15
      %p97 = scmp.lt.s32.totalorder %s15, 3
      %p98 = pnand %p96, %p97
      %p99 = pneg %p98
      // Predicated region
      $region9: #{tpu_custom_call.1} parent=5 // pred_check
        _
      $region10: #{tpu_custom_call.1} parent=5 // pred_check_branch
        %101 = sbr.rel (%p98) target = $region12
      $region11: #{tpu_custom_call.1} parent=5 // pred_region
        %s102 = ssub.s32 %s15, 1
        // Predicated region
        $region13: #{tpu_custom_call.1} parent=11 // pred_check
          %p103 = pneg %p62
        $region14: #{tpu_custom_call.1} parent=11 // pred_check_branch
          %105 = sbr.rel (%p103) target = $region16
        $region15: #{tpu_custom_call.1} parent=11 // pred_region
          %107 = vsyncadd [#allocation6], 0
          %s109 = sshll.u32 %s1, 4
          %s110 = int_to_ptr.hbm [resolvable:$true] %s109
          %s111 = sshll.u32 [#allocation5], 4
          %s112 = int_to_ptr.vmem [resolvable:$true] %s111
          %114 = dma.hbm_to_vmem [thread:$0]  %s110, 16, %s112, [#allocation6]
        $region16: #{tpu_custom_call.1} parent=11 // pred_fallthru
          _
      $region12: #{tpu_custom_call.1} parent=5 // pred_fallthru
        _
      %p115 = scmp.lt.s32.totalorder %s15, 2
      // Predicated region
      $region17: #{tpu_custom_call.1} parent=5 // pred_check
        %p116 = pneg %p115
      $region18: #{tpu_custom_call.1} parent=5 // pred_check_branch
        %118 = sbr.rel (%p116) target = $region20
      $region19: #{tpu_custom_call.1} parent=5 // pred_region
        // Predicated region
        $region21: #{tpu_custom_call.1} parent=19 // pred_check
          %p119 = pneg %p35
        $region22: #{tpu_custom_call.1} parent=19 // pred_check_branch
          %121 = sbr.rel (%p119) target = $region24
        $region23: #{tpu_custom_call.1} parent=19 // pred_region
          %s122 = sand.u32 %s25, 1
          %s123 = scalar_lea.sflag [#allocation3], %s122
          %s124 = sand.u32 %s25, 1
          %s125 = smul.addr %s124, 8
          %s126 = scalar_lea.vmem [#allocation2], %s125
          %128 = vsyncadd %s123, 0
          %s129 = smul.addr %s15, 8
          %s130 = scalar_lea.hbm %s0, %s129
          %s132 = sshll.u32 %s130, 4
          %s133 = int_to_ptr.hbm [resolvable:$true] %s132
          %s134 = sshll.u32 %s126, 4
          %s135 = int_to_ptr.vmem [resolvable:$true] %s134
          %137 = dma.hbm_to_vmem [thread:$0]  %s133, 128, %s135, %s123
        $region24: #{tpu_custom_call.1} parent=19 // pred_fallthru
          _
      $region20: #{tpu_custom_call.1} parent=5 // pred_fallthru
        _
      %p138 = scmp.le.s32.totalorder 1, %s15
      %p139 = scmp.lt.s32.totalorder %s15, 3
      %p140 = pnand %p138, %p139
      %p141 = pneg %p140
      // Predicated region
      $region25: #{tpu_custom_call.1} parent=5 // pred_check
        _
      $region26: #{tpu_custom_call.1} parent=5 // pred_check_branch
        %143 = sbr.rel (%p140) target = $region28
      $region27: #{tpu_custom_call.1} parent=5 // pred_region
        %s144 = ssub.s32 %s15, 1
        %s145 = sand.u32 %s28, 1
        %s146 = scalar_lea.sflag [#allocation3], %s145
        %s147 = sand.u32 %s28, 1
        %s148 = smul.addr %s147, 8
        %s149 = scalar_lea.vmem [#allocation2], %s148
        // Predicated region
        $region29: #{tpu_custom_call.1} parent=27 // pred_check
          %p150 = pneg %p41
        $region30: #{tpu_custom_call.1} parent=27 // pred_check_branch
          %152 = sbr.rel (%p150) target = $region32
        $region31: #{tpu_custom_call.1} parent=27 // pred_region
          %154 = dma.done %s146, 128
        $region32: #{tpu_custom_call.1} parent=27 // pred_fallthru
          _
        // Predicated region
        $region33: #{tpu_custom_call.1} parent=27 // pred_check
          %p155 = pneg %p62
        $region34: #{tpu_custom_call.1} parent=27 // pred_check_branch
          %157 = sbr.rel (%p155) target = $region36
        $region35: #{tpu_custom_call.1} parent=27 // pred_region
          %159 = dma.done [#allocation6], 16
        $region36: #{tpu_custom_call.1} parent=27 // pred_fallthru
          _
        %s160 = sand.u32 %s28, 1
        %s161 = scalar_lea.sflag [#allocation3], %s160
        %s162 = sand.u32 %s28, 1
        %s163 = smul.addr %s162, 8
        %s164 = scalar_lea.vmem [#allocation2], %s163
        %p165 = pneg %p41
        %p166 = pneg %p38
        %p167 = pneg %p62
        %p168 = pneg %p59
        %p169 = pneg %p88
        %p170 = pneg %p85
        %s171 = sand.u32 %s75, 1
        %s172 = scalar_lea.sflag [#allocation4], %s171
        %s173 = sand.u32 %s75, 1
        %s174 = smul.addr %s173, 8
        %s175 = scalar_lea.vmem [#allocation7], %s174
        %v176 = vld [vmem:[#allocation5] sm:$0x1]
        %v177 = vld [vmem:[%s149] sm:$0xff]
        %v178 = vlaneseq
        %v179 = vand.u32 %v178, 127
        %vm180 = vcmp.lt.s32.totalorder %v179, 32
        %v181 = vmul.f32 %v177, %v177
        %v182 = vsel %vm180, %v181, 0.0
        %183 = vadd.xlane.f32.xlu0 %v182
        %v184 = vpop.xlane.xlu0 %183
        %v185 = vmul.f32 %v184, 0.03125
        %v186 = vadd.f32 %v185, 1e-06
        %v187 = vrsqrt.pop %v186
        %v188 = vmul.f32 %v187, %v186
        %v189 = vmul.f32 %v188, %v187
        %v190 = vmul.f32 0.5, %v189
        %v191 = vsub.f32 1.5, %v190
        %v192 = vmul.f32 %v187, %v191
        %vm193 = vweird.f32 %v186
        %vm194 = vweird.f32 %v187
        %vm195 = vmor %vm193, %vm194
        %v196 = vsel %vm195, %v187, %v192
        %v197 = vmul.f32 %v177, %v196
        %v199 = vperm.slane %v176, 0
        %v201 = vmul.f32 %v197, %v199
        %202 = vst [vmem:[%s175] sm:$0xff] %v201
        %s203 = sand.u32 %s75, 1
        %s204 = scalar_lea.sflag [#allocation4], %s203
        %s205 = sand.u32 %s75, 1
        %s206 = smul.addr %s205, 8
        %s207 = scalar_lea.vmem [#allocation7], %s206
        // Predicated region
        $region37: #{tpu_custom_call.1} parent=27 // pred_check
          %p208 = pneg %p85
        $region38: #{tpu_custom_call.1} parent=27 // pred_check_branch
          %210 = sbr.rel (%p208) target = $region40
        $region39: #{tpu_custom_call.1} parent=27 // pred_region
          %212 = vsyncadd %s204, 0
          %s213 = smul.addr %s20, 8
          %s214 = scalar_lea.hbm %s2, %s213
          %s216 = sshll.u32 %s207, 4
          %s217 = int_to_ptr.vmem [resolvable:$true] %s216
          %s218 = sshll.u32 %s214, 4
          %s219 = int_to_ptr.hbm [resolvable:$true] %s218
          %221 = dma.vmem_to_hbm [thread:$0]  %s217, 128, %s219, %s204
        $region40: #{tpu_custom_call.1} parent=27 // pred_fallthru
          _
      $region28: #{tpu_custom_call.1} parent=5 // pred_fallthru
        _
      %p222 = scmp.le.s32.totalorder 2, %s15
      // Predicated region
      $region41: #{tpu_custom_call.1} parent=5 // pred_check
        %p223 = pneg %p222
      $region42: #{tpu_custom_call.1} parent=5 // pred_check_branch
        %225 = sbr.rel (%p223) target = $region44
      $region43: #{tpu_custom_call.1} parent=5 // pred_region
        %s226 = ssub.s32 %s15, 2
        // Predicated region
        $region45: #{tpu_custom_call.1} parent=43 // pred_check
          %p227 = pneg %p91
        $region46: #{tpu_custom_call.1} parent=43 // pred_check_branch
          %229 = sbr.rel (%p227) target = $region48
        $region47: #{tpu_custom_call.1} parent=43 // pred_region
          %s230 = sand.u32 %s76, 1
          %s231 = scalar_lea.sflag [#allocation4], %s230
          %s232 = sand.u32 %s76, 1
          %s233 = smul.addr %s232, 8
          %s234 = scalar_lea.vmem [#allocation7], %s233
          %236 = dma.done %s231, 128
        $region48: #{tpu_custom_call.1} parent=43 // pred_fallthru
          _
      $region44: #{tpu_custom_call.1} parent=5 // pred_fallthru
        _
    $region6: #{tpu_custom_call.1} parent=1 // loop_footer
      %s19 = sadd.s32 1, %s15
    $region7: #{tpu_custom_call.1} parent=1 // loop_footer_branch
      %14 = sbr.rel target = $region3
    $region8: #{tpu_custom_call.1} parent=1 // loop_exit
      _
    %237 = vsyncpa [#allocation3], 1
    %s238 = scalar_lea.sflag [#allocation3], 1
    %239 = vsyncpa %s238, 1
    %240 = vsyncpa [#allocation6], 1
    %241 = vsyncpa [#allocation4], 1
    %s242 = scalar_lea.sflag [#allocation4], 1
    %243 = vsyncpa %s242, 1

</llo_original>
